<compile_context>
chip_gen: v6e
topology: v6e:2x2x1
jax: 0.10.0
libtpu: 0.0.40
codegen_flags: <defaults>
</compile_context>

<pallas_src>
import functools

import jax
import jax.numpy as jnp
from jax.experimental import pallas as pl
from jax.experimental.pallas import tpu as pltpu


def _cosine_reduce_kernel(fb_ref, fa_ref, zi_row_ref, zi_col_ref, qii_ref, *,
                          tile, num_blocks, dblk, shift):
    """Grid (n, k), upper triangle only (k >= n).

    fb_ref : (tile, D)  rows of reduction block k, already normalized * 1/temp.
    fa_ref : (D, tile)  pre-transposed normalized rows of output block n.
    zi_row_ref : (num_blocks, tile) resident; row n accumulates sum_r e[r, c].
    zi_col_ref : (M, 1)             resident; k-block slice accumulates sum_c e[r, c].
    qii_ref    : (num_blocks, tile) resident; positive-pair values.
    e[r, c] = q[k*tile + r, n*tile + c]   (q symmetric).
    """
    n = pl.program_id(0)
    k = pl.program_id(1)

    @pl.when((n == 0) & (k == 0))
    def _init():
        zi_row_ref[...] = jnp.zeros_like(zi_row_ref)
        zi_col_ref[...] = jnp.zeros_like(zi_col_ref)
        qii_ref[...] = jnp.zeros_like(qii_ref)

    @pl.when(k >= n)
    def _compute():
        # Plain (t, D) @ (D, t): no per-step transpose of either operand.
        e = jnp.exp(jnp.dot(fb_ref[...], fa_ref[...],
                            preferred_element_type=jnp.float32))  # (tile, tile)

        # Column sums of q for the n-block: sublane reduce -> lane-dense row n.
        zi_row_ref[pl.ds(n, 1), :] += jnp.sum(e, axis=0, keepdims=True)

        if num_blocks > 1:
            # Symmetry: the same e block also gives the row sums of q for the
            # k-block over the n-block columns (only for strictly off-diagonal
            # blocks, otherwise we would double count).
            @pl.when(k > n)
            def _sym():
                start = k * tile
                if tile % 8 == 0:
                    start = pl.multiple_of(start, 8)
                zi_col_ref[pl.ds(start, tile), :] += jnp.sum(
                    e, axis=1, keepdims=True)

        # Positive pairs: partner of global row i = n*tile + c is (i + B) % M.
        # With tile | B (shift == 0) they all live on the main diagonal of the
        # single block k == n + dblk; with tile == M (single block) they live
        # on the diagonal shifted by B.
        @pl.when(k == n + dblk)
        def _pos():
            r_i = jax.lax.broadcasted_iota(jnp.int32, (tile, tile), 0)
            c_i = jax.lax.broadcasted_iota(jnp.int32, (tile, tile), 1)
            if shift == 0:
                mask = r_i == c_i
            else:
                tgt = c_i + shift
                tgt = jnp.where(tgt >= tile, tgt - tile, tgt)
                mask = r_i == tgt
            diag = jnp.sum(jnp.where(mask, e, 0.0), axis=0, keepdims=True)
            qii_ref[pl.ds(n, 1), :] = diag
            if dblk > 0:
                # qii[i + B] == qii[i] exactly (q symmetric), so fill the
                # second half from the same block.
                qii_ref[pl.ds(n + dblk, 1), :] = diag


def _pick_tile(M, half_b, target=1024):
    """Largest tile t <= target with t % 128 == 0 and t | half_b, else M.

    t | half_b guarantees all positive pairs of an output block live on the
    main diagonal of a single reduction block, and makes num_blocks even.
    """
    if M <= target:
        return M
    upper = min(target, half_b)
    upper -= upper % 128
    for t in range(upper, 127, -128):
        if half_b % t == 0:
            return t
    return M  # fall back to a single (full-extent) block


def cosine_loss_forward(feats, state, temp=0.5, tile_target=1024):
    """Functional equivalent of CosineLoss.forward; returns (loss, new_state)."""
    M, D = feats.shape
    assert M % 2 == 0, "CosineLoss expects a 2B-row feature batch"
    B = M // 2
    tile = _pick_tile(M, B, tile_target)
    # Invariants the qii/diagonal logic relies on (per review).
    assert tile == M or (B % tile == 0 and tile % 128 == 0), (tile, M, B)
    num_blocks = M // tile
    if num_blocks == 1 and M * M * 4 > 16 * 1024 * 1024:
        # TODO(synk): add a padding path for awkward M instead of bailing out.
        raise ValueError(f"no VMEM-safe tile found for M={M}")
    dblk = B // tile          # block offset of the positive-pair diagonal
    shift = B % tile          # nonzero only in the single-block case

    # ---- one-shot wrapper-side prep (hoisted out of the grid) --------------
    # F.normalize(x, dim=1, p=2) == x * rsqrt(max(||x||^2, eps^2)), eps=1e-12.
    feats32 = feats.astype(jnp.float32)
    sq = jnp.sum(feats32 * feats32, axis=1, keepdims=True)
    fn = feats32 * jax.lax.rsqrt(jnp.maximum(sq, 1e-24))
    fb_s = fn * (1.0 / temp)   # fold 1/temp into the row operand (M*D mults)
    fa_t = fn.T                # (D, M): pre-transposed -> (t,D)@(D,t) in-kernel

    kernel = functools.partial(_cosine_reduce_kernel, tile=tile,
                               num_blocks=num_blocks, dblk=dblk, shift=shift)

    # VMEM budget: the (tile, tile) e temp (+ a few same-size temporaries),
    # double-buffered inputs, resident O(M) outputs, plus slack.
    e_bytes = tile * tile * 4
    vmem_limit = int(min(max(6 * e_bytes + 8 * tile * D * 4 + M * 640
                             + (4 << 20), 16 << 20), 48 << 20))

    zi_row, zi_col, qii_rows = pl.pallas_call(
        kernel,
        out_shape=(
            jax.ShapeDtypeStruct((num_blocks, tile), jnp.float32),  # col sums
            jax.ShapeDtypeStruct((M, 1), jnp.float32),              # row sums
            jax.ShapeDtypeStruct((num_blocks, tile), jnp.float32),  # qii
        ),
        grid=(num_blocks, num_blocks),
        in_specs=[
            pl.BlockSpec((tile, D), lambda n, k: (k, 0)),   # reduction rows
            pl.BlockSpec((D, tile), lambda n, k: (0, n)),   # output cols (pre-T)
        ],
        out_specs=(
            pl.BlockSpec((num_blocks, tile), lambda n, k: (0, 0)),  # resident
            pl.BlockSpec((M, 1), lambda n, k: (0, 0)),              # resident
            pl.BlockSpec((num_blocks, tile), lambda n, k: (0, 0)),  # resident
        ),
        compiler_params=pltpu.CompilerParams(
            # Shared (resident) accumulators across n => both axes arbitrary.
            # TODO(synk): on v7x split the triangle over a leading core axis.
            dimension_semantics=("arbitrary", "arbitrary"),
            vmem_limit_bytes=vmem_limit,
        ),
    )(fb_s, fa_t)

    qii = qii_rows.reshape(M)                              # (M,) == q[pos_mask]
    z_i = (zi_row.reshape(M) + zi_col[:, 0]).reshape(M, 1)  # q.sum(dim=1, keepdim)

    # ---- plain-JAX glue (no_grad block in PyTorch) --------------------------
    N, rho, alpha = state["N"], state["rho"], state["alpha"]
    s_inv, omega = state["s_inv"], state["omega"]

    momentum = jnp.where(rho < 0, N / (N + omega), rho)           # shape (1,)
    Z_hat = s_inv[:, None] / N * (2 * B - 1)                      # [N,1]; needs N == 2B
    Z = (1.0 - momentum) * z_i + momentum * Z_hat                 # [M, 1]

    # loss = -qii / Z : [M] vs [M,1] -> [M, M] (exact torch broadcasting)
    loss = -qii / Z

    # ---- update_s(qii, q) side effects (returned as new buffer state) -------
    # q.sum(dim=1, keepdim=True) == z_i  and  q.mean() == z_i.sum() / M^2.
    Bii = M
    Bij = M
    xi = (jnp.sum(alpha * qii)
          + jnp.sum((1.0 - alpha) * z_i / (Bij - 1)))
    omega_new = alpha * Bii + (1.0 - alpha) * Bij                 # shape (1,)
    momentum2 = jnp.where(rho < 0, N / (N + omega_new), rho)
    weighted_sum_count = xi / omega_new
    s_inv_new = momentum2 * s_inv + (1.0 - momentum2) * N * weighted_sum_count

    new_state = dict(
        state,
        qii=qii.mean()[None],
        qij=(jnp.sum(z_i) / (M * M))[None],
        qcoeff=N / s_inv,
        xi=jnp.reshape(xi, (1,)),
        omega=jnp.reshape(omega_new, (1,)),
        s_inv=s_inv_new,
    )
    return loss, new_state


def ref_forward(feats, state, temp=0.5):
    """Pure-JAX reference mirroring the PyTorch forward (for verification)."""
    fn = feats / jnp.maximum(
        jnp.sqrt(jnp.sum(feats * feats, axis=1, keepdims=True)), 1e-12)
    M = feats.shape[0]
    B = M // 2
    q = jnp.exp(fn @ fn.T / temp)
    idx = jnp.arange(M)
    qii = q[idx, (idx + B) % M]
    momentum = jnp.where(state["rho"] < 0,
                         state["N"] / (state["N"] + state["omega"]),
                         state["rho"])
    Z_hat = state["s_inv"][:, None] / state["N"] * (2 * B - 1)
    Z_i = jnp.sum(q, axis=1, keepdims=True)
    Z = (1.0 - momentum) * Z_i + momentum * Z_hat
    return -qii / Z, qii, Z_i


if __name__ == "__main__":
    def make_state(N, S_init=1.0, omega0=0.0):
        # Deterministic buffer init, exactly as CLSABase.__init__ (omega0 lets
        # the test make Z depend on Z_i elementwise).
        return {
            "N": jnp.full((1,), float(N), jnp.float32),
            "rho": jnp.full((1,), -1.0, jnp.float32),
            "alpha": jnp.full((1,), 0.5, jnp.float32),
            "omega": jnp.full((1,), float(omega0), jnp.float32),
            "xi": jnp.zeros((1,), jnp.float32),
            "qii": jnp.zeros((1,), jnp.float32),
            "qij": jnp.zeros((1,), jnp.float32),
            "qcoeff": jnp.zeros((1,), jnp.float32),
            "s_inv": jnp.full((N,), float(N) ** S_init, jnp.float32),
        }

    key = jax.random.PRNGKey(0)

    # Case 1: tiny batch (single-block / shifted-diagonal path), B=4, D=32.
    # Case 2: B=256, D=32 with tile_target=128 -> 4x4 triangular multi-block path.
    for (Bh, D, tile_target, omega0) in [(4, 32, 1024, 0.0), (256, 32, 128, 64.0)]:
        M = 2 * Bh
        N = M  # N must equal 2B for the original module's Z_hat broadcast.
        key, sub = jax.random.split(key)
        feats = jax.random.normal(sub, (M, D), dtype=jnp.float32)
        state = make_state(N, omega0=omega0)

        loss, new_state = cosine_loss_forward(feats, state,
                                              tile_target=tile_target)
        loss = jax.block_until_ready(loss)

        ref_loss, ref_qii, ref_zi = ref_forward(feats, state)
        assert loss.shape == (M, M), loss.shape
        # Tolerance allows for rsqrt/temp-fold/accumulation-order differences.
        assert jnp.allclose(loss, ref_loss, rtol=1e-4, atol=1e-5), \
            f"loss mismatch (M={M})"
        assert jnp.allclose(new_state["qii"], ref_qii.mean()[None],
                            rtol=1e-4, atol=1e-5), f"qii mismatch (M={M})"
        assert jnp.allclose(new_state["qij"], (jnp.sum(ref_zi) / (M * M))[None],
                            rtol=1e-4, atol=1e-5), f"qij mismatch (M={M})"

    print("KERNEL_OK")
</pallas_src>

<mosaic_0001>
module attributes {stable_mosaic.version = 11 : i64} {
  func.func @_cosine_reduce_kernel(%arg0: i32, %arg1: i32, %arg2: memref<8x32xf32, #tpu.memory_space<vmem>>, %arg3: memref<32x8xf32, #tpu.memory_space<vmem>>, %arg4: memref<1x8xf32, #tpu.memory_space<vmem>>, %arg5: memref<8x1xf32, #tpu.memory_space<vmem>>, %arg6: memref<1x8xf32, #tpu.memory_space<vmem>>) attributes {dimension_semantics = [#tpu.dimension_semantics<arbitrary>, #tpu.dimension_semantics<arbitrary>], iteration_bounds = array<i64: 1, 1>, scalar_prefetch = 0 : i64, scratch_operands = 0 : i64, tpu.core_type = #tpu.core_type<tc>, window_params = [{transform_indices = @transform_0, window_bounds = array<i64: 8, 32>}, {transform_indices = @transform_1, window_bounds = array<i64: 32, 8>}, {pipeline_mode = #tpu.pipeline_mode<synchronous>, transform_indices = @transform_2, window_bounds = array<i64: 1, 8>}, {pipeline_mode = #tpu.pipeline_mode<synchronous>, transform_indices = @transform_3, window_bounds = array<i64: 8, 1>}, {pipeline_mode = #tpu.pipeline_mode<synchronous>, transform_indices = @transform_4, window_bounds = array<i64: 1, 8>}]} {
    %c0_i32 = arith.constant 0 : i32
    %0 = arith.cmpi eq, %arg0, %c0_i32 : i32
    %c0_i32_0 = arith.constant 0 : i32
    %1 = arith.cmpi eq, %arg1, %c0_i32_0 : i32
    %2 = arith.andi %0, %1 : i1
    %3 = arith.extui %2 : i1 to i32
    %c0_i32_1 = arith.constant 0 : i32
    %4 = arith.cmpi ne, %3, %c0_i32_1 : i32
    scf.if %4 {
      %cst = arith.constant 0.000000e+00 : f32
      %8 = vector.broadcast %cst : f32 to vector<1x8xf32>
      %c0 = arith.constant 0 : index
      %c0_3 = arith.constant 0 : index
      %9 = vector.load %arg4[%c0, %c0_3] : memref<1x8xf32, #tpu.memory_space<vmem>>, vector<1x8xf32>
      tpu.vector_store %arg4[%c0, %c0_3], %8 {strides = array<i32>} : memref<1x8xf32, #tpu.memory_space<vmem>>, vector<1x8xf32>,
      %cst_4 = arith.constant 0.000000e+00 : f32
      %10 = vector.broadcast %cst_4 : f32 to vector<8x1xf32>
      %c0_5 = arith.constant 0 : index
      %c0_6 = arith.constant 0 : index
      %11 = vector.load %arg5[%c0_5, %c0_6] : memref<8x1xf32, #tpu.memory_space<vmem>>, vector<8x1xf32>
      tpu.vector_store %arg5[%c0_5, %c0_6], %10 {strides = array<i32>} : memref<8x1xf32, #tpu.memory_space<vmem>>, vector<8x1xf32>,
      %cst_7 = arith.constant 0.000000e+00 : f32
      %12 = vector.broadcast %cst_7 : f32 to vector<1x8xf32>
      %c0_8 = arith.constant 0 : index
      %c0_9 = arith.constant 0 : index
      %13 = vector.load %arg6[%c0_8, %c0_9] : memref<1x8xf32, #tpu.memory_space<vmem>>, vector<1x8xf32>
      tpu.vector_store %arg6[%c0_8, %c0_9], %12 {strides = array<i32>} : memref<1x8xf32, #tpu.memory_space<vmem>>, vector<1x8xf32>,
    } else {
    }
    %5 = arith.cmpi sge, %arg1, %arg0 : i32
    %6 = arith.extui %5 : i1 to i32
    %c0_i32_2 = arith.constant 0 : i32
    %7 = arith.cmpi ne, %6, %c0_i32_2 : i32
    scf.if %7 {
      %c0 = arith.constant 0 : index
      %c0_3 = arith.constant 0 : index
      %8 = vector.load %arg2[%c0, %c0_3] : memref<8x32xf32, #tpu.memory_space<vmem>>, vector<8x32xf32>
      %c0_4 = arith.constant 0 : index
      %c0_5 = arith.constant 0 : index
      %9 = vector.load %arg3[%c0_4, %c0_5] : memref<32x8xf32, #tpu.memory_space<vmem>>, vector<32x8xf32>
      %cst = arith.constant dense<0.000000e+00> : vector<8x8xf32>
      %10 = tpu.matmul %8, %9, %cst {dimension_numbers = #tpu.dot_dimension_numbers<[1], [0], [0], [1], [0, 0, 1, 1], [], []>} : vector<8x32xf32>, vector<32x8xf32>, vector<8x8xf32> -> vector<8x8xf32>
      %11 = math.exp %10 : vector<8x8xf32>
      %12 = arith.index_cast %arg0 : i32 to index
      %c0_6 = arith.constant 0 : index
      %13 = vector.load %arg4[%12, %c0_6] : memref<1x8xf32, #tpu.memory_space<vmem>>, vector<1x8xf32>
      %cst_7 = arith.constant dense<0.000000e+00> : vector<8xf32>
      %14 = vector.multi_reduction <add>, %11, %cst_7 [0] : vector<8x8xf32> to vector<8xf32>
      %15 = vector.shape_cast %14 : vector<8xf32> to vector<1x8xf32>
      %16 = arith.addf %13, %15 : vector<1x8xf32>
      %17 = arith.index_cast %arg0 : i32 to index
      %c0_8 = arith.constant 0 : index
      %18 = vector.load %arg4[%17, %c0_8] : memref<1x8xf32, #tpu.memory_space<vmem>>, vector<1x8xf32>
      tpu.vector_store %arg4[%17, %c0_8], %16 {strides = array<i32>} : memref<1x8xf32, #tpu.memory_space<vmem>>, vector<1x8xf32>,
      %c0_i32_9 = arith.constant 0 : i32
      %19 = arith.addi %arg0, %c0_i32_9 : i32
      %20 = arith.cmpi eq, %arg1, %19 : i32
      %21 = arith.extui %20 : i1 to i32
      %c0_i32_10 = arith.constant 0 : i32
      %22 = arith.cmpi ne, %21, %c0_i32_10 : i32
      scf.if %22 {
        %23 = tpu.iota {dimensions = array<i32: 0>} : vector<8x8xi32>
        %24 = tpu.iota {dimensions = array<i32: 1>} : vector<8x8xi32>
        %c4_i32 = arith.constant 4 : i32
        %25 = vector.broadcast %c4_i32 : i32 to vector<8x8xi32>
        %26 = arith.addi %24, %25 : vector<8x8xi32>
        %c8_i32 = arith.constant 8 : i32
        %27 = vector.broadcast %c8_i32 : i32 to vector<8x8xi32>
        %28 = arith.cmpi sge, %26, %27 : vector<8x8xi32>
        %c8_i32_11 = arith.constant 8 : i32
        %29 = vector.broadcast %c8_i32_11 : i32 to vector<8x8xi32>
        %30 = arith.subi %26, %29 : vector<8x8xi32>
        %31 = arith.select %28, %30, %26 : vector<8x8xi1>, vector<8x8xi32>
        %32 = arith.cmpi eq, %23, %31 : vector<8x8xi32>
        %cst_12 = arith.constant 0.000000e+00 : f32
        %33 = vector.broadcast %cst_12 : f32 to vector<8x8xf32>
        %34 = arith.select %32, %11, %33 : vector<8x8xi1>, vector<8x8xf32>
        %cst_13 = arith.constant dense<0.000000e+00> : vector<8xf32>
        %35 = vector.multi_reduction <add>, %34, %cst_13 [0] : vector<8x8xf32> to vector<8xf32>
        %36 = vector.shape_cast %35 : vector<8xf32> to vector<1x8xf32>
        %37 = arith.index_cast %arg0 : i32 to index
        %c0_14 = arith.constant 0 : index
        %38 = vector.load %arg6[%37, %c0_14] : memref<1x8xf32, #tpu.memory_space<vmem>>, vector<1x8xf32>
        tpu.vector_store %arg6[%37, %c0_14], %36 {strides = array<i32>} : memref<1x8xf32, #tpu.memory_space<vmem>>, vector<1x8xf32>,
      } else {
      }
    } else {
    }
    return
  }
  func.func @transform_0(%arg0: i32, %arg1: i32) -> (i32, i32) {
    %c0_i32 = arith.constant 0 : i32
    %c0_i32_0 = arith.constant 0 : i32
    return %arg1, %c0_i32 : i32, i32
  }
  func.func @transform_1(%arg0: i32, %arg1: i32) -> (i32, i32) {
    %c0_i32 = arith.constant 0 : i32
    %c0_i32_0 = arith.constant 0 : i32
    return %c0_i32, %arg0 : i32, i32
  }
  func.func @transform_2(%arg0: i32, %arg1: i32) -> (i32, i32) {
    %c0_i32 = arith.constant 0 : i32
    %c0_i32_0 = arith.constant 0 : i32
    %c0_i32_1 = arith.constant 0 : i32
    return %c0_i32, %c0_i32_0 : i32, i32
  }
  func.func @transform_3(%arg0: i32, %arg1: i32) -> (i32, i32) {
    %c0_i32 = arith.constant 0 : i32
    %c0_i32_0 = arith.constant 0 : i32
    %c0_i32_1 = arith.constant 0 : i32
    return %c0_i32, %c0_i32_0 : i32, i32
  }
  func.func @transform_4(%arg0: i32, %arg1: i32) -> (i32, i32) {
    %c0_i32 = arith.constant 0 : i32
    %c0_i32_0 = arith.constant 0 : i32
    %c0_i32_1 = arith.constant 0 : i32
    return %c0_i32, %c0_i32_0 : i32, i32
  }
}

</mosaic_0001>

<llo_original>
// kernel: tpu_custom_call.1
$region0: #{tpu_custom_call.1}
  #allocation0 [shape = 'u32[]', space=smem, size = 0x4, offset = 0x4, fixed_abs, tag = 'smem constant byte address 0x4 - core index']
  #allocation1 [shape = 'u32[144,128]{1,0:T(1,128)}', space=vmem, size = 0x12000, scoped, tag = 'internal scratch']
  %s0 = inlined_call_operand.vmem [shape: f32[8,32], index: 0, kind: input, shape index: {}]
  %s1 = inlined_call_operand.vmem [shape: f32[32,8], index: 1, kind: input, shape index: {}]
  %s2 = inlined_call_operand.hbm [shape: f32[1,8], index: 2, kind: output, shape index: {0}]
  %s3 = inlined_call_operand.vmem [shape: f32[8,1], index: 3, kind: output, shape index: {1}]
  %s4 = inlined_call_operand.hbm [shape: f32[1,8], index: 4, kind: output, shape index: {2}]
  %5 = xla_tuple %s2, %s3, %s4
  %s6 = sld [smem:[#allocation0]]
  $region46: #{tpu_custom_call.1} parent=0
    _
  %s8 = ssub.s32 1, %s6
  %s9 = scalar_select 0, %s8, %s6
  $region1: #{tpu_custom_call.1} parent=0
    #allocation2 [shape = 'u8[512]{0}', space=vmem, size = 0x400, scoped, tag = 'output window, operand 0, single buffered']
    #allocation3 [shape = 's32[1]{0}', space=sflag, size = 0x4, scoped, tag = 'scoped memory for tpu_custom_call.1']
    #allocation4 [shape = 'u8[512]{0}', space=vmem, size = 0x400, scoped, tag = 'output window, operand 2, single buffered']
    #allocation5 [shape = 's32[1]{0}', space=sflag, size = 0x4, scoped, tag = 'scoped memory for tpu_custom_call.1']
    %10 = vsyncpa [#allocation3], 0
    %11 = vsyncpa [#allocation5], 0
    // Predicated region
    $region2: #{tpu_custom_call.1} parent=1 // pred_check
      _
    $region3: #{tpu_custom_call.1} parent=1 // pred_check_branch
      %13 = sbr.rel (0) target = $region5
    $region4: #{tpu_custom_call.1} parent=1 // pred_region
      _
    $region5: #{tpu_custom_call.1} parent=1 // pred_fallthru
      _
    // Predicated region
    $region6: #{tpu_custom_call.1} parent=1 // pred_check
      _
    $region7: #{tpu_custom_call.1} parent=1 // pred_check_branch
      %15 = sbr.rel (0) target = $region9
    $region8: #{tpu_custom_call.1} parent=1 // pred_region
      _
    $region9: #{tpu_custom_call.1} parent=1 // pred_fallthru
      _
    %p16 = scmp.eq.s32.totalorder 0, 0
    %p17 = scmp.eq.s32.totalorder 0, 0
    %p18 = pnand %p16, %p17
    %p19 = pneg %p18
    // Predicated region
    $region10: #{tpu_custom_call.1} parent=1 // pred_check
      _
    $region11: #{tpu_custom_call.1} parent=1 // pred_check_branch
      %21 = sbr.rel (%p18) target = $region13
    $region12: #{tpu_custom_call.1} parent=1 // pred_region
      %vm22 = vcmask 57344
      %23 = vst.msk [vmem:[#allocation2] sm:$0x1] %vm22, 0.0
      %vm24 = vcmask 7168
      %25 = vst.msk [vmem:[%s3] sm:$0xff] %vm24, 0.0
      %26 = vst.msk [vmem:[#allocation4] sm:$0x1] %vm22, 0.0
    $region13: #{tpu_custom_call.1} parent=1 // pred_fallthru
      _
    %p27 = scmp.ge.s32.totalorder 0, 0
    // Predicated region
    $region14: #{tpu_custom_call.1} parent=1 // pred_check
      %p28 = pneg %p27
    $region15: #{tpu_custom_call.1} parent=1 // pred_check_branch
      %30 = sbr.rel (%p28) target = $region17
    $region16: #{tpu_custom_call.1} parent=1 // pred_region
      %v31 = vld [vmem:[%s0] sm:$0xff]
      %v32 = vld [vmem:[%s1] sm:$0xff]
      %v33 = vld [vmem:[%s1 + $0x8] sm:$0xff]
      %v34 = vld [vmem:[%s1 + $0x10] sm:$0xff]
      %v35 = vld [vmem:[%s1 + $0x18] sm:$0xff]
      %vm36 = vcmask 261120
      %v38 = vsel %vm36, %v31, 0
      %40 = vmatprep.subr.mxu0 0.0
      %41 = vmatpush1.msra.mxu0 0.0
      %42 = vmatprep.subr.mxu0 0.0
      %43 = vmatpush1.msra.mxu0 0.0
      %44 = vmatprep.subr.mxu0 0.0
      %45 = vmatpush1.msra.mxu0 0.0
      %46 = vmatprep.subr.mxu0 0.0
      %47 = vmatpush1.msra.mxu0 0.0
      %48 = vmatprep.subr.mxu0 0.0
      %49 = vmatpush1.msra.mxu0 0.0
      %50 = vmatprep.subr.mxu0 0.0
      %51 = vmatpush1.msra.mxu0 0.0
      %52 = vmatprep.subr.mxu0 0.0
      %53 = vmatpush1.msra.mxu0 0.0
      %54 = vmatprep.subr.mxu0 0.0
      %55 = vmatpush1.msra.mxu0 0.0
      %56 = vmatprep.subr.mxu0 0.0
      %57 = vmatpush1.msra.mxu0 0.0
      %58 = vmatprep.subr.mxu0 0.0
      %59 = vmatpush1.msra.mxu0 0.0
      %60 = vmatprep.subr.mxu0 0.0
      %61 = vmatpush1.msra.mxu0 0.0
      %62 = vmatprep.subr.mxu0 0.0
      %63 = vmatpush1.msra.mxu0 0.0
      %64 = vmatprep.subr.mxu0 0.0
      %65 = vmatpush1.msra.mxu0 %v35
      %66 = vmatprep.subr.mxu0 0.0
      %67 = vmatpush1.msra.mxu0 %v34
      %68 = vmatprep.subr.mxu0 0.0
      %69 = vmatpush1.msra.mxu0 %v33
      %70 = vmatprep.subr.mxu0 0.0
      %71 = vmatpush1.msra.mxu0 %v32
      %72 = vmatprep.subr.mxu0 0.0
      %73 = vmatpush2.msra.mxu0 0.0
      %74 = vmatprep.subr.mxu0 0.0
      %75 = vmatpush2.msra.mxu0 0.0
      %76 = vmatprep.subr.mxu0 0.0
      %77 = vmatpush2.msra.mxu0 0.0
      %78 = vmatprep.subr.mxu0 0.0
      %79 = vmatpush2.msra.mxu0 0.0
      %80 = vmatprep.subr.mxu0 0.0
      %81 = vmatpush2.msra.mxu0 0.0
      %82 = vmatprep.subr.mxu0 0.0
      %83 = vmatpush2.msra.mxu0 0.0
      %84 = vmatprep.subr.mxu0 0.0
      %85 = vmatpush2.msra.mxu0 0.0
      %86 = vmatprep.subr.mxu0 0.0
      %87 = vmatpush2.msra.mxu0 0.0
      %88 = vmatprep.subr.mxu0 0.0
      %89 = vmatpush2.msra.mxu0 0.0
      %90 = vmatprep.subr.mxu0 0.0
      %91 = vmatpush2.msra.mxu0 0.0
      %92 = vmatprep.subr.mxu0 0.0
      %93 = vmatpush2.msra.mxu0 0.0
      %94 = vmatprep.subr.mxu0 0.0
      %95 = vmatpush2.msra.mxu0 0.0
      %96 = vmatprep.subr.mxu0 0.0
      %97 = vmatpush2.msra.mxu0 0.0
      %98 = vmatprep.subr.mxu0 0.0
      %99 = vmatpush2.msra.mxu0 0.0
      %100 = vmatprep.subr.mxu0 0.0
      %101 = vmatpush2.msra.mxu0 0.0
      %102 = vmatprep.subr.mxu0 0.0
      %103 = vmatpush2.msra.mxu0 0.0
      %104 = vmatprep.mubr.f32.mxu0 0.0
      %105 = vmatmul.mubr.f32.gmra.mxu0 %v38
      %v106 = vpop.f32.mrf.mxu0
      %v107 = vadd.f32 0.0, %v106
      %v108 = vpop.f32.mrf.mxu0
      %109 = vdwg.mxu0
      %v110 = vmul.f32 %v107, 1.442695
      %v111 = vpow.pop %v110
      %v112 = vld [vmem:[#allocation2] sm:$0x1]
      %vm113 = vcmask 64512
      %v114 = vsel %vm113, %v111, 0.0
      %v115 = vrot.slane %v114, 4
      %v116 = vadd.f32 %v114, %v115
      %v117 = vrot.slane %v116, 2
      %v118 = vadd.f32 %v116, %v117
      %v119 = vrot.slane %v118, 1
      %v120 = vadd.f32 %v118, %v119
      %v121 = vadd.f32 %v112, %v120
      %vm122 = vcmask 57344
      %123 = vst.msk [vmem:[#allocation2] sm:$0x1] %vm122, %v121
      %p124 = scmp.eq.s32.totalorder 0, 0
      // Predicated region
      $region18: #{tpu_custom_call.1} parent=16 // pred_check
        %p125 = pneg %p124
      $region19: #{tpu_custom_call.1} parent=16 // pred_check_branch
        %127 = sbr.rel (%p125) target = $region21
      $region20: #{tpu_custom_call.1} parent=16 // pred_region
        %v128 = vlaneseq
        %v129 = vshrl.u32 %v128, 7
        %v130 = vlaneseq
        %v131 = vand.u32 %v130, 127
        %v132 = vadd.s32 %v131, 4
        %vm133 = vcmp.ge.s32.totalorder %v132, 8
        %v134 = vsub.s32 %v132, 8
        %v135 = vsel %vm133, %v134, %v132
        %vm136 = vcmp.eq.s32.totalorder %v129, %v135
        %v137 = vsel %vm136, %v111, 0.0
        %v138 = vsel %vm113, %v137, 0.0
        %v139 = vrot.slane %v138, 4
        %v140 = vadd.f32 %v138, %v139
        %v141 = vrot.slane %v140, 2
        %v142 = vadd.f32 %v140, %v141
        %v143 = vrot.slane %v142, 1
        %v144 = vadd.f32 %v142, %v143
        %145 = vst.msk [vmem:[#allocation4] sm:$0x1] %vm122, %v144
      $region21: #{tpu_custom_call.1} parent=16 // pred_fallthru
        _
    $region17: #{tpu_custom_call.1} parent=1 // pred_fallthru
      _
    // Predicated region
    $region22: #{tpu_custom_call.1} parent=1 // pred_check
      _
    $region23: #{tpu_custom_call.1} parent=1 // pred_check_branch
      %147 = sbr.rel (0) target = $region25
    $region24: #{tpu_custom_call.1} parent=1 // pred_region
      %s149 = ssub.s32 16, 16
      %150 = vsyncadd [#allocation3], %s149
      %s152 = sshll.u32 [#allocation2], 4
      %s153 = int_to_ptr.vmem [resolvable:$true] %s152
      %155 = dma.vmem_to_hbm [thread:$0]  %s153, 16, %s2, [#allocation3]
    $region25: #{tpu_custom_call.1} parent=1 // pred_fallthru
      _
    // Predicated region
    $region26: #{tpu_custom_call.1} parent=1 // pred_check
      _
    $region27: #{tpu_custom_call.1} parent=1 // pred_check_branch
      %157 = sbr.rel (0) target = $region29
    $region28: #{tpu_custom_call.1} parent=1 // pred_region
      _
    $region29: #{tpu_custom_call.1} parent=1 // pred_fallthru
      _
    // Predicated region
    $region30: #{tpu_custom_call.1} parent=1 // pred_check
      _
    $region31: #{tpu_custom_call.1} parent=1 // pred_check_branch
      %159 = sbr.rel (0) target = $region33
    $region32: #{tpu_custom_call.1} parent=1 // pred_region
      %s161 = ssub.s32 16, 16
      %162 = vsyncadd [#allocation5], %s161
      %s164 = sshll.u32 [#allocation4], 4
      %s165 = int_to_ptr.vmem [resolvable:$true] %s164
      %167 = dma.vmem_to_hbm [thread:$0]  %s165, 16, %s4, [#allocation5]
    $region33: #{tpu_custom_call.1} parent=1 // pred_fallthru
      _
    // Predicated region
    $region34: #{tpu_custom_call.1} parent=1 // pred_check
      _
    $region35: #{tpu_custom_call.1} parent=1 // pred_check_branch
      %169 = sbr.rel (0) target = $region37
    $region36: #{tpu_custom_call.1} parent=1 // pred_region
      %170 = dma.done [#allocation3], 16
    $region37: #{tpu_custom_call.1} parent=1 // pred_fallthru
      _
    // Predicated region
    $region38: #{tpu_custom_call.1} parent=1 // pred_check
      _
    $region39: #{tpu_custom_call.1} parent=1 // pred_check_branch
      %172 = sbr.rel (0) target = $region41
    $region40: #{tpu_custom_call.1} parent=1 // pred_region
      _
    $region41: #{tpu_custom_call.1} parent=1 // pred_fallthru
      _
    // Predicated region
    $region42: #{tpu_custom_call.1} parent=1 // pred_check
      _
    $region43: #{tpu_custom_call.1} parent=1 // pred_check_branch
      %174 = sbr.rel (0) target = $region45
    $region44: #{tpu_custom_call.1} parent=1 // pred_region
      %175 = dma.done [#allocation5], 16
    $region45: #{tpu_custom_call.1} parent=1 // pred_fallthru
      _
    %176 = vsyncpa [#allocation3], 1
    %177 = vsyncpa [#allocation5], 1

</llo_original>
